<compile_context>
chip_gen: v6e
topology: v6e:2x2x1
jax: 0.10.0
libtpu: 0.0.40
codegen_flags: <defaults>
</compile_context>

<pallas_src>
import functools

import jax
import jax.numpy as jnp
from jax.experimental import pallas as pl
from jax.experimental.pallas import tpu as pltpu

VMEM_LIMIT_BYTES = 32 * 1024 * 1024
LN_EPS = 1e-12


# ----------------------------------------------------------------------------
# small helpers
# ----------------------------------------------------------------------------
def _round_up(x, m):
    return ((x + m - 1) // m) * m


def _pick_tm(m):
    """Row-tile size for M-tiled grids."""
    for tm in (512, 256, 128, 64, 32, 16, 8):
        if m % tm == 0:
            return tm
    return m


def _gelu_tanh(y):
    # TODO(synk): HF BERT uses erf-GELU; tanh approximation differs by <1e-3.
    return 0.5 * y * (1.0 + jnp.tanh(0.7978845608028654 * (y + 0.044715 * y * y * y)))


def _masked_layernorm(x, gamma, beta, n_real, eps):
    """LayerNorm over the first `n_real` lanes of a zero-padded last dim."""
    n_pad = x.shape[-1]
    mask = (jax.lax.broadcasted_iota(jnp.int32, (1, n_pad), 1) < n_real)
    mask = mask.astype(jnp.float32)
    inv_n = 1.0 / float(n_real)
    mean = jnp.sum(x, axis=-1, keepdims=True) * inv_n      # padded lanes are zero
    diff = (x - mean) * mask
    var = jnp.sum(diff * diff, axis=-1, keepdims=True) * inv_n
    return diff * jax.lax.rsqrt(var + eps) * gamma + beta


# ----------------------------------------------------------------------------
# Pallas kernels
# ----------------------------------------------------------------------------
def _layernorm_kernel(x_ref, g_ref, b_ref, o_ref, *, n_real, eps):
    x = x_ref[...].astype(jnp.float32)
    o_ref[...] = _masked_layernorm(x, g_ref[...], b_ref[...], n_real,
                                   eps).astype(o_ref.dtype)


def _encoder_layer_kernel(x_ref, bias_ref,
                          wqkv_ref, bqkv_ref, wo_ref, bo_ref,
                          g1_ref, bln1_ref,
                          w1_ref, bi1_ref, w2_ref, bi2_ref,
                          g2_ref, bln2_ref,
                          o_ref, *, nh, dh, h_pad, scale, n_real, eps):
    """One full BERT encoder layer for one batch element (grid step).

    x_ref:    (S, h_pad)  residual-stream activation (trailing lanes zero-pad).
    bias_ref: (1, S)      additive key-mask bias.
    qkv layout after the fused projection: [q heads | k heads | v heads],
    head-major, each head zero-padded to dh lanes.
    """
    x = x_ref[...]                                            # (S, Hp) f32
    bias = bias_ref[...]                                      # (1, S)

    # ---- fused Q/K/V projection (one MXU pass) ----
    qkv = jnp.dot(x.astype(jnp.bfloat16), wqkv_ref[...],
                  preferred_element_type=jnp.float32) + bqkv_ref[...]

    # ---- multi-head self-attention (static unroll over heads) ----
    heads = []
    for h in range(nh):
        q = qkv[:, h * dh:(h + 1) * dh].astype(jnp.bfloat16)
        k = qkv[:, h_pad + h * dh: h_pad + (h + 1) * dh].astype(jnp.bfloat16)
        v = qkv[:, 2 * h_pad + h * dh: 2 * h_pad + (h + 1) * dh].astype(jnp.bfloat16)
        # q @ k^T without materializing the transpose
        s = jax.lax.dot_general(q, k, (((1,), (1,)), ((), ())),
                                preferred_element_type=jnp.float32)
        s = s * scale + bias
        s = s - jnp.max(s, axis=-1, keepdims=True)
        p = jnp.exp(s)
        p = p * pl.reciprocal(jnp.sum(p, axis=-1, keepdims=True), approx=True)
        heads.append(jnp.dot(p.astype(jnp.bfloat16), v,
                             preferred_element_type=jnp.float32))
    ctx = jnp.concatenate(heads, axis=-1)                     # (S, Hp)

    # ---- out-projection + residual + LayerNorm ----
    attn = jnp.dot(ctx.astype(jnp.bfloat16), wo_ref[...],
                   preferred_element_type=jnp.float32) + bo_ref[...] + x
    x1 = _masked_layernorm(attn, g1_ref[...], bln1_ref[...], n_real, eps)

    # ---- feed-forward (GELU) + residual + LayerNorm ----
    ff = jnp.dot(x1.astype(jnp.bfloat16), w1_ref[...],
                 preferred_element_type=jnp.float32) + bi1_ref[...]
    ff = _gelu_tanh(ff)
    out = jnp.dot(ff.astype(jnp.bfloat16), w2_ref[...],
                  preferred_element_type=jnp.float32) + bi2_ref[...] + x1
    o_ref[...] = _masked_layernorm(out, g2_ref[...], bln2_ref[...], n_real,
                                   eps).astype(o_ref.dtype)


def _pooler_classifier_kernel(cls_ref, wp_ref, bp_ref, wc_ref, bc_ref, o_ref):
    cls = cls_ref[...].astype(jnp.bfloat16)
    pooled = jnp.tanh(
        jnp.dot(cls, wp_ref[...], preferred_element_type=jnp.float32) + bp_ref[...])
    # TODO(synk): nn.Dropout(0.3) is identity here (eval-mode inference).
    logits = jnp.dot(pooled.astype(jnp.bfloat16), wc_ref[...],
                     preferred_element_type=jnp.float32) + bc_ref[...]
    o_ref[...] = logits.astype(o_ref.dtype)


# ----------------------------------------------------------------------------
# pallas_call wrappers
# ----------------------------------------------------------------------------
def _compiler_params(sem):
    return pltpu.CompilerParams(dimension_semantics=sem,
                                vmem_limit_bytes=VMEM_LIMIT_BYTES)


def layernorm(x, gamma, beta, n_real, eps=LN_EPS):
    M, N = x.shape
    tm = _pick_tm(M)
    kernel = functools.partial(_layernorm_kernel, n_real=n_real, eps=eps)
    return pl.pallas_call(
        kernel,
        out_shape=jax.ShapeDtypeStruct((M, N), jnp.float32),
        grid=(M // tm,),
        in_specs=[
            pl.BlockSpec((tm, N), lambda i: (i, 0)),
            pl.BlockSpec((1, N), lambda i: (0, 0)),
            pl.BlockSpec((1, N), lambda i: (0, 0)),
        ],
        out_specs=pl.BlockSpec((tm, N), lambda i: (i, 0)),
        compiler_params=_compiler_params(("parallel",)),
    )(x, gamma.reshape(1, N), beta.reshape(1, N))


def encoder_layer(x, mask_bias, lyr, B, S, nh, dh, h_pad, scale, n_real):
    """x: (B*S, h_pad) f32; mask_bias: (B, 1, S)."""
    Hp = h_pad
    Ip = lyr["w1"].shape[1]
    kernel = functools.partial(_encoder_layer_kernel, nh=nh, dh=dh, h_pad=Hp,
                               scale=scale, n_real=n_real, eps=LN_EPS)
    const = lambda b: (0, 0)
    return pl.pallas_call(
        kernel,
        out_shape=jax.ShapeDtypeStruct((B * S, Hp), jnp.float32),
        grid=(B,),
        in_specs=[
            pl.BlockSpec((S, Hp), lambda b: (b, 0)),            # x (residual stream)
            pl.BlockSpec((None, 1, S), lambda b: (b, 0, 0)),    # mask bias
            pl.BlockSpec((Hp, 3 * Hp), const),                  # w_qkv
            pl.BlockSpec((1, 3 * Hp), const),                   # b_qkv
            pl.BlockSpec((Hp, Hp), const),                      # wo
            pl.BlockSpec((1, Hp), const),                       # bo
            pl.BlockSpec((1, Hp), const),                       # ln1 gamma
            pl.BlockSpec((1, Hp), const),                       # ln1 beta
            pl.BlockSpec((Hp, Ip), const),                      # w1
            pl.BlockSpec((1, Ip), const),                       # b1
            pl.BlockSpec((Ip, Hp), const),                      # w2
            pl.BlockSpec((1, Hp), const),                       # b2
            pl.BlockSpec((1, Hp), const),                       # ln2 gamma
            pl.BlockSpec((1, Hp), const),                       # ln2 beta
        ],
        out_specs=pl.BlockSpec((S, Hp), lambda b: (b, 0)),
        compiler_params=_compiler_params(("parallel",)),
    )(x, mask_bias,
      lyr["w_qkv"], lyr["b_qkv"].reshape(1, -1),
      lyr["wo"], lyr["bo"].reshape(1, -1),
      lyr["ln1_g"].reshape(1, -1), lyr["ln1_b"].reshape(1, -1),
      lyr["w1"], lyr["b1"].reshape(1, -1),
      lyr["w2"], lyr["b2"].reshape(1, -1),
      lyr["ln2_g"].reshape(1, -1), lyr["ln2_b"].reshape(1, -1))


def pooler_classifier(cls, wp, bp, wc, bc):
    B, Hp = cls.shape
    Cp = wc.shape[1]
    return pl.pallas_call(
        _pooler_classifier_kernel,
        out_shape=jax.ShapeDtypeStruct((B, Cp), jnp.float32),
        grid=(1,),
        in_specs=[
            pl.BlockSpec((B, Hp), lambda i: (0, 0)),
            pl.BlockSpec((Hp, Hp), lambda i: (0, 0)),
            pl.BlockSpec((1, Hp), lambda i: (0, 0)),
            pl.BlockSpec((Hp, Cp), lambda i: (0, 0)),
            pl.BlockSpec((1, Cp), lambda i: (0, 0)),
        ],
        out_specs=pl.BlockSpec((B, Cp), lambda i: (0, 0)),
        compiler_params=_compiler_params(("arbitrary",)),
    )(cls, wp, bp.reshape(1, Hp), wc, bc.reshape(1, Cp))


# ----------------------------------------------------------------------------
# Model (glue in plain JAX, compute in the kernels above)
# ----------------------------------------------------------------------------
def bert_class_forward(params, ids, mask, token_type_ids, cfg):
    B, S = ids.shape
    H_real, nh = cfg["hidden"], cfg["heads"]
    dh_real = H_real // nh
    Hp = params["word_emb"].shape[1]          # padded hidden (384)
    dhp = Hp // nh                            # padded head dim (32)
    scale = 1.0 / (dh_real ** 0.5)            # scale uses the REAL head dim

    # --- embeddings (gathers kept as glue) ---
    emb = (params["word_emb"][ids]
           + params["pos_emb"][jnp.arange(S)][None, :, :]
           + params["type_emb"][token_type_ids])              # (B, S, Hp)
    x = layernorm(emb.reshape(B * S, Hp),
                  params["emb_ln_g"], params["emb_ln_b"], H_real)
    # embedding dropout: identity (eval mode)

    # additive attention-mask bias, shape (B, 1, S)
    mask_bias = ((1.0 - mask.astype(jnp.float32)) * -10000.0).reshape(B, 1, S)

    # --- one fused Pallas kernel per encoder layer ---
    for layer in params["layers"]:
        x = encoder_layer(x, mask_bias, layer, B, S, nh, dhp, Hp, scale, H_real)

    cls = x.reshape(B, S, Hp)[:, 0, :]                        # (B, Hp)

    # fused pooler (tanh dense on [CLS]) + dropout(identity) + classifier
    logits_pad = pooler_classifier(cls, params["wp"], params["bp"],
                                   params["wc"], params["bc"])  # (B, Cp)
    return logits_pad[:, :cfg["num_comments"]]


# ----------------------------------------------------------------------------
# Deterministic parameter init (real BERT shapes) + padding / fusion prep
# ----------------------------------------------------------------------------
def init_params(key, cfg):
    H, I, L = cfg["hidden"], cfg["intermediate"], cfg["layers"]

    def dense(k, fin, fout):
        return jax.random.normal(k, (fin, fout), jnp.float32) * 0.02

    keys = iter(jax.random.split(key, 8 + 8 * L))
    params = {
        "word_emb": jax.random.normal(next(keys), (cfg["vocab"], H), jnp.float32) * 0.02,
        "pos_emb": jax.random.normal(next(keys), (cfg["max_pos"], H), jnp.float32) * 0.02,
        "type_emb": jax.random.normal(next(keys), (2, H), jnp.float32) * 0.02,
        "emb_ln_g": jnp.ones((H,), jnp.float32),
        "emb_ln_b": jnp.zeros((H,), jnp.float32),
        "wp": dense(next(keys), H, H),
        "bp": jnp.zeros((H,), jnp.float32),
        "wc": dense(next(keys), H, cfg["num_comments"]),
        "bc": jnp.zeros((cfg["num_comments"],), jnp.float32),
        "layers": [],
    }
    for _ in range(L):
        params["layers"].append({
            "wq": dense(next(keys), H, H), "bq": jnp.zeros((H,), jnp.float32),
            "wk": dense(next(keys), H, H), "bk": jnp.zeros((H,), jnp.float32),
            "wv": dense(next(keys), H, H), "bv": jnp.zeros((H,), jnp.float32),
            "wo": dense(next(keys), H, H), "bo": jnp.zeros((H,), jnp.float32),
            "ln1_g": jnp.ones((H,), jnp.float32), "ln1_b": jnp.zeros((H,), jnp.float32),
            "w1": dense(next(keys), H, I), "b1": jnp.zeros((I,), jnp.float32),
            "w2": dense(next(keys), I, H), "b2": jnp.zeros((H,), jnp.float32),
            "ln2_g": jnp.ones((H,), jnp.float32), "ln2_b": jnp.zeros((H,), jnp.float32),
        })
    return params


def prepare_params(raw, cfg):
    """Zero-pad to 128-lane multiples, fuse QKV, cast matmul weights to bf16."""
    H, I, nh = cfg["hidden"], cfg["intermediate"], cfg["heads"]
    dh = H // nh
    dhp = _round_up(dh, 32)                 # 26 -> 32
    Hp = nh * dhp                           # 384 = 3*128
    Ip = _round_up(I, 128)                  # 600 -> 640
    Cp = _round_up(cfg["num_comments"], 128)
    assert Hp % 128 == 0

    def pad_to(x, shape):
        return jnp.pad(x, [(0, t - s) for s, t in zip(x.shape, shape)])

    def pad_head_cols(w):                   # (H, H) head-major cols -> (Hp, Hp)
        return pad_to(w.reshape(H, nh, dh), (Hp, nh, dhp)).reshape(Hp, Hp)

    def pad_head_vec(b):                    # (H,) -> (Hp,)
        return pad_to(b.reshape(nh, dh), (nh, dhp)).reshape(Hp)

    def pad_head_rows(w):                   # (H, H) head-major rows -> (Hp, Hp)
        return pad_to(w.reshape(nh, dh, H), (nh, dhp, Hp)).reshape(Hp, Hp)

    bf16 = jnp.bfloat16
    out = {
        "word_emb": pad_to(raw["word_emb"], (raw["word_emb"].shape[0], Hp)),
        "pos_emb": pad_to(raw["pos_emb"], (raw["pos_emb"].shape[0], Hp)),
        "type_emb": pad_to(raw["type_emb"], (2, Hp)),
        "emb_ln_g": pad_to(raw["emb_ln_g"], (Hp,)),
        "emb_ln_b": pad_to(raw["emb_ln_b"], (Hp,)),
        "wp": pad_to(raw["wp"], (Hp, Hp)).astype(bf16),
        "bp": pad_to(raw["bp"], (Hp,)),
        "wc": pad_to(raw["wc"], (Hp, Cp)).astype(bf16),
        "bc": pad_to(raw["bc"], (Cp,)),
        "layers": [],
    }
    for lyr in raw["layers"]:
        w_qkv = jnp.concatenate([pad_head_cols(lyr["wq"]),
                                 pad_head_cols(lyr["wk"]),
                                 pad_head_cols(lyr["wv"])], axis=1)
        b_qkv = jnp.concatenate([pad_head_vec(lyr["bq"]),
                                 pad_head_vec(lyr["bk"]),
                                 pad_head_vec(lyr["bv"])])
        out["layers"].append({
            "w_qkv": w_qkv.astype(bf16), "b_qkv": b_qkv,
            "wo": pad_head_rows(lyr["wo"]).astype(bf16),
            "bo": pad_to(lyr["bo"], (Hp,)),
            "ln1_g": pad_to(lyr["ln1_g"], (Hp,)),
            "ln1_b": pad_to(lyr["ln1_b"], (Hp,)),
            "w1": pad_to(lyr["w1"], (Hp, Ip)).astype(bf16),
            "b1": pad_to(lyr["b1"], (Ip,)),
            "w2": pad_to(lyr["w2"], (Ip, Hp)).astype(bf16),
            "b2": pad_to(lyr["b2"], (Hp,)),
            "ln2_g": pad_to(lyr["ln2_g"], (Hp,)),
            "ln2_b": pad_to(lyr["ln2_b"], (Hp,)),
        })
    return out


if __name__ == "__main__":
    # rubert-tiny-like config (hidden=312 so the classifier is Linear(312, C)),
    # tiny vocab / seq / batch for a fast synthetic run.
    cfg = dict(vocab=128, max_pos=64, hidden=312, heads=12,
               intermediate=600, layers=3, num_comments=5)
    B, S = 2, 8

    root = jax.random.PRNGKey(0)
    pkey, ikey = jax.random.split(root)
    params = prepare_params(init_params(pkey, cfg), cfg)

    ids = jax.random.randint(ikey, (B, S), 0, cfg["vocab"], dtype=jnp.int32)
    # second sequence has 2 padding positions masked out
    mask = (jnp.arange(S)[None, :] < jnp.array([[S], [S - 2]])).astype(jnp.int32)
    token_type_ids = jnp.zeros((B, S), jnp.int32)

    logits = bert_class_forward(params, ids, mask, token_type_ids, cfg)
    logits = jax.block_until_ready(logits)
    assert logits.shape == (B, cfg["num_comments"])
    assert jnp.all(jnp.isfinite(logits))
    print("KERNEL_OK")
</pallas_src>

<mosaic_0001>
module attributes {stable_mosaic.version = 11 : i64} {
  func.func @_layernorm_kernel(%arg0: i32, %arg1: memref<16x384xf32, #tpu.memory_space<vmem>>, %arg2: memref<1x384xf32, #tpu.memory_space<vmem>>, %arg3: memref<1x384xf32, #tpu.memory_space<vmem>>, %arg4: memref<16x384xf32, #tpu.memory_space<vmem>>) attributes {dimension_semantics = [#tpu.dimension_semantics<parallel>], iteration_bounds = array<i64: 1>, scalar_prefetch = 0 : i64, scratch_operands = 0 : i64, tpu.core_type = #tpu.core_type<tc>, window_params = [{transform_indices = @transform_0, window_bounds = array<i64: 16, 384>}, {pipeline_mode = #tpu.pipeline_mode<synchronous>, transform_indices = @transform_1, window_bounds = array<i64: 1, 384>}, {pipeline_mode = #tpu.pipeline_mode<synchronous>, transform_indices = @transform_2, window_bounds = array<i64: 1, 384>}, {transform_indices = @transform_3, window_bounds = array<i64: 16, 384>}]} {
    %c0 = arith.constant 0 : index
    %c0_0 = arith.constant 0 : index
    %0 = vector.load %arg1[%c0, %c0_0] : memref<16x384xf32, #tpu.memory_space<vmem>>, vector<16x384xf32>
    %c0_1 = arith.constant 0 : index
    %c0_2 = arith.constant 0 : index
    %1 = vector.load %arg2[%c0_1, %c0_2] : memref<1x384xf32, #tpu.memory_space<vmem>>, vector<1x384xf32>
    %c0_3 = arith.constant 0 : index
    %c0_4 = arith.constant 0 : index
    %2 = vector.load %arg3[%c0_3, %c0_4] : memref<1x384xf32, #tpu.memory_space<vmem>>, vector<1x384xf32>
    %3 = tpu.iota {dimensions = array<i32: 1>} : vector<1x384xi32>
    %c312_i32 = arith.constant 312 : i32
    %4 = vector.broadcast %c312_i32 : i32 to vector<1x384xi32>
    %5 = arith.cmpi slt, %3, %4 : vector<1x384xi32>
    %6 = arith.extui %5 : vector<1x384xi1> to vector<1x384xi32>
    %7 = arith.sitofp %6 : vector<1x384xi32> to vector<1x384xf32>
    %cst = arith.constant dense<0.000000e+00> : vector<16xf32>
    %8 = vector.multi_reduction <add>, %0, %cst [1] : vector<16x384xf32> to vector<16xf32>
    %9 = vector.shape_cast %8 : vector<16xf32> to vector<16x1xf32>
    %cst_5 = arith.constant 0.00320512825 : f32
    %10 = vector.broadcast %cst_5 : f32 to vector<16x1xf32>
    %11 = arith.mulf %9, %10 : vector<16x1xf32>
    %12 = vector.broadcast %11 : vector<16x1xf32> to vector<16x384xf32>
    %13 = arith.subf %0, %12 : vector<16x384xf32>
    %14 = vector.broadcast %7 : vector<1x384xf32> to vector<16x384xf32>
    %15 = arith.mulf %13, %14 : vector<16x384xf32>
    %16 = arith.mulf %15, %15 : vector<16x384xf32>
    %cst_6 = arith.constant dense<0.000000e+00> : vector<16xf32>
    %17 = vector.multi_reduction <add>, %16, %cst_6 [1] : vector<16x384xf32> to vector<16xf32>
    %18 = vector.shape_cast %17 : vector<16xf32> to vector<16x1xf32>
    %cst_7 = arith.constant 0.00320512825 : f32
    %19 = vector.broadcast %cst_7 : f32 to vector<16x1xf32>
    %20 = arith.mulf %18, %19 : vector<16x1xf32>
    %cst_8 = arith.constant 9.99999996E-13 : f32
    %21 = vector.broadcast %cst_8 : f32 to vector<16x1xf32>
    %22 = arith.addf %20, %21 : vector<16x1xf32>
    %23 = math.rsqrt %22 : vector<16x1xf32>
    %24 = vector.broadcast %23 : vector<16x1xf32> to vector<16x384xf32>
    %25 = arith.mulf %15, %24 : vector<16x384xf32>
    %26 = vector.broadcast %1 : vector<1x384xf32> to vector<16x384xf32>
    %27 = arith.mulf %25, %26 : vector<16x384xf32>
    %28 = vector.broadcast %2 : vector<1x384xf32> to vector<16x384xf32>
    %29 = arith.addf %27, %28 : vector<16x384xf32>
    %c0_9 = arith.constant 0 : index
    %c0_10 = arith.constant 0 : index
    %30 = vector.load %arg4[%c0_9, %c0_10] : memref<16x384xf32, #tpu.memory_space<vmem>>, vector<16x384xf32>
    tpu.vector_store %arg4[%c0_9, %c0_10], %29 {strides = array<i32>} : memref<16x384xf32, #tpu.memory_space<vmem>>, vector<16x384xf32>,
    return
  }
  func.func @transform_0(%arg0: i32) -> (i32, i32) {
    %c0_i32 = arith.constant 0 : i32
    %c0_i32_0 = arith.constant 0 : i32
    return %arg0, %c0_i32 : i32, i32
  }
  func.func @transform_1(%arg0: i32) -> (i32, i32) {
    %c0_i32 = arith.constant 0 : i32
    %c0_i32_0 = arith.constant 0 : i32
    %c0_i32_1 = arith.constant 0 : i32
    return %c0_i32, %c0_i32_0 : i32, i32
  }
  func.func @transform_2(%arg0: i32) -> (i32, i32) {
    %c0_i32 = arith.constant 0 : i32
    %c0_i32_0 = arith.constant 0 : i32
    %c0_i32_1 = arith.constant 0 : i32
    return %c0_i32, %c0_i32_0 : i32, i32
  }
  func.func @transform_3(%arg0: i32) -> (i32, i32) {
    %c0_i32 = arith.constant 0 : i32
    %c0_i32_0 = arith.constant 0 : i32
    return %arg0, %c0_i32 : i32, i32
  }
}

</mosaic_0001>

<llo_original>
// kernel: tpu_custom_call.1
$region0: #{tpu_custom_call.1}
  #allocation0 [shape = 'u32[]', space=smem, size = 0x4, offset = 0x4, fixed_abs, tag = 'smem constant byte address 0x4 - core index']
  #allocation1 [shape = 'u32[144,128]{1,0:T(1,128)}', space=vmem, size = 0x12000, scoped, tag = 'internal scratch']
  %s0 = inlined_call_operand.hbm [shape: f32[16,384], index: 0, kind: input, shape index: {}]
  %s1 = inlined_call_operand.hbm [shape: f32[1,384], index: 1, kind: input, shape index: {}]
  %s2 = inlined_call_operand.vmem [shape: f32[1,384], index: 2, kind: input, shape index: {}]
  %s3 = inlined_call_operand.hbm [shape: f32[16,384], index: 3, kind: output, shape index: {}]
  %s4 = sld [smem:[#allocation0]]
  $region30: #{tpu_custom_call.1} parent=0
    _
  %s6 = ssub.s32 1, %s4
  %s7 = scalar_select 0, %s6, %s4
  $region1: #{tpu_custom_call.1} parent=0
    #allocation2 [shape = 'u8[24576]{0}', space=vmem, size = 0x6000, scoped, tag = 'input window, operand 0, single buffered']
    #allocation3 [shape = 's32[1]{0}', space=sflag, size = 0x4, scoped, tag = 'scoped memory for tpu_custom_call.1']
    #allocation4 [shape = 's32[1]{0}', space=sflag, size = 0x4, scoped, tag = 'scoped memory for tpu_custom_call.1']
    #allocation5 [shape = 'u8[1536]{0}', space=vmem, size = 0x800, scoped, tag = 'input window, operand 1, single buffered']
    #allocation6 [shape = 's32[1]{0}', space=sflag, size = 0x4, scoped, tag = 'scoped memory for tpu_custom_call.1']
    #allocation7 [shape = 'u8[24576]{0}', space=vmem, size = 0x6000, scoped, tag = 'output window, operand 0, single buffered']
    %8 = vsyncpa [#allocation3], 0
    %9 = vsyncpa [#allocation6], 0
    %10 = vsyncpa [#allocation4], 0
    // Predicated region
    $region2: #{tpu_custom_call.1} parent=1 // pred_check
      _
    $region3: #{tpu_custom_call.1} parent=1 // pred_check_branch
      %12 = sbr.rel (0) target = $region5
    $region4: #{tpu_custom_call.1} parent=1 // pred_region
      %s14 = ssub.s32 768, 768
      %15 = vsyncadd [#allocation3], %s14
      %s16 = sshll.u32 [#allocation2], 4
      %s17 = int_to_ptr.vmem [resolvable:$true] %s16
      %22 = dma.hbm_to_vmem [thread:$0]  %s0, 768, %s17, [#allocation3], 384, 384, 24
    $region5: #{tpu_custom_call.1} parent=1 // pred_fallthru
      _
    // Predicated region
    $region6: #{tpu_custom_call.1} parent=1 // pred_check
      _
    $region7: #{tpu_custom_call.1} parent=1 // pred_check_branch
      %24 = sbr.rel (0) target = $region9
    $region8: #{tpu_custom_call.1} parent=1 // pred_region
      %s26 = ssub.s32 48, 48
      %27 = vsyncadd [#allocation6], %s26
      %s29 = sshll.u32 [#allocation5], 4
      %s30 = int_to_ptr.vmem [resolvable:$true] %s29
      %32 = dma.hbm_to_vmem [thread:$0]  %s1, 48, %s30, [#allocation6]
    $region9: #{tpu_custom_call.1} parent=1 // pred_fallthru
      _
    // Predicated region
    $region10: #{tpu_custom_call.1} parent=1 // pred_check
      _
    $region11: #{tpu_custom_call.1} parent=1 // pred_check_branch
      %34 = sbr.rel (0) target = $region13
    $region12: #{tpu_custom_call.1} parent=1 // pred_region
      _
    $region13: #{tpu_custom_call.1} parent=1 // pred_fallthru
      _
    // Predicated region
    $region14: #{tpu_custom_call.1} parent=1 // pred_check
      _
    $region15: #{tpu_custom_call.1} parent=1 // pred_check_branch
      %36 = sbr.rel (0) target = $region17
    $region16: #{tpu_custom_call.1} parent=1 // pred_region
      %37 = dma.done [#allocation3], 768
    $region17: #{tpu_custom_call.1} parent=1 // pred_fallthru
      _
    // Predicated region
    $region18: #{tpu_custom_call.1} parent=1 // pred_check
      _
    $region19: #{tpu_custom_call.1} parent=1 // pred_check_branch
      %39 = sbr.rel (0) target = $region21
    $region20: #{tpu_custom_call.1} parent=1 // pred_region
      %40 = dma.done [#allocation6], 48
    $region21: #{tpu_custom_call.1} parent=1 // pred_fallthru
      _
    %v41 = vld [vmem:[#allocation2] sm:$0xff]
    %v42 = vld [vmem:[#allocation2 + $0x8] sm:$0xff]
    %v43 = vld [vmem:[#allocation2 + $0x10] sm:$0xff]
    %v44 = vld [vmem:[#allocation2 + $0x18] sm:$0xff]
    %v45 = vld [vmem:[#allocation2 + $0x20] sm:$0xff]
    %v46 = vld [vmem:[#allocation2 + $0x28] sm:$0xff]
    %v47 = vld [vmem:[#allocation5] sm:$0x7]
    %v48 = vld [vmem:[%s2] sm:$0x7]
    %v49 = vlaneseq
    %v50 = vand.u32 %v49, 127
    %v51 = vadd.s32 %v50, 128
    %v52 = vadd.s32 %v50, 256
    %vm53 = vcmp.lt.s32.totalorder %v50, 312
    %vm54 = vcmp.lt.s32.totalorder %v51, 312
    %vm55 = vcmp.lt.s32.totalorder %v52, 312
    %v56 = vsel %vm53, 1, 0
    %v57 = vsel %vm54, 1, 0
    %v58 = vsel %vm55, 1, 0
    %v59 = vcvt.s32.f32 %v56
    %v60 = vcvt.s32.f32 %v57
    %v61 = vcvt.s32.f32 %v58
    %v62 = vadd.f32 %v41, %v42
    %v63 = vadd.f32 %v62, %v43
    %64 = vadd.xlane.f32.xlu0 %v63
    %v65 = vpop.xlane.xlu0 %64
    %v66 = vadd.f32 %v44, %v45
    %v67 = vadd.f32 %v66, %v46
    %68 = vadd.xlane.f32.xlu0 %v67
    %v69 = vpop.xlane.xlu0 %68
    %v70 = vmul.f32 %v65, 0.0032051282
    %v71 = vmul.f32 %v69, 0.0032051282
    %v72 = vsub.f32 %v41, %v70
    %v73 = vsub.f32 %v42, %v70
    %v74 = vsub.f32 %v43, %v70
    %v75 = vsub.f32 %v44, %v71
    %v76 = vsub.f32 %v45, %v71
    %v77 = vsub.f32 %v46, %v71
    %v78 = vmul.f32 %v72, %v59
    %v79 = vmul.f32 %v73, %v60
    %v80 = vmul.f32 %v74, %v61
    %v81 = vmul.f32 %v75, %v59
    %v82 = vmul.f32 %v76, %v60
    %v83 = vmul.f32 %v77, %v61
    %v84 = vmul.f32 %v78, %v78
    %v85 = vmul.f32 %v79, %v79
    %v86 = vmul.f32 %v80, %v80
    %v87 = vmul.f32 %v81, %v81
    %v88 = vmul.f32 %v82, %v82
    %v89 = vmul.f32 %v83, %v83
    %v90 = vadd.f32 %v84, %v85
    %v91 = vadd.f32 %v90, %v86
    %92 = vadd.xlane.f32.xlu0 %v91
    %v93 = vpop.xlane.xlu0 %92
    %v94 = vadd.f32 %v87, %v88
    %v95 = vadd.f32 %v94, %v89
    %96 = vadd.xlane.f32.xlu0 %v95
    %v97 = vpop.xlane.xlu0 %96
    %v98 = vmul.f32 %v93, 0.0032051282
    %v99 = vmul.f32 %v97, 0.0032051282
    %v100 = vadd.f32 %v98, 1e-12
    %v101 = vadd.f32 %v99, 1e-12
    %v102 = vrsqrt.pop %v100
    %v103 = vrsqrt.pop %v101
    %v104 = vmul.f32 %v78, %v102
    %v105 = vmul.f32 %v79, %v102
    %v106 = vmul.f32 %v80, %v102
    %v107 = vmul.f32 %v81, %v103
    %v108 = vmul.f32 %v82, %v103
    %v109 = vmul.f32 %v83, %v103
    %v111 = vlaneseq
    %v112 = vshrl.u32 %v111, 7
    %v113 = vsub.s32 0, %v112
    %v114 = vrot.slane %v47, %v113
    %v115 = vlaneseq
    %v116 = vshrl.u32 %v115, 7
    %v117 = vsub.s32 1, %v116
    %v118 = vrot.slane %v47, %v117
    %v119 = vlaneseq
    %v120 = vshrl.u32 %v119, 7
    %v121 = vsub.s32 2, %v120
    %v122 = vrot.slane %v47, %v121
    %v126 = vmul.f32 %v104, %v114
    %v127 = vmul.f32 %v105, %v118
    %v128 = vmul.f32 %v106, %v122
    %v129 = vmul.f32 %v107, %v114
    %v130 = vmul.f32 %v108, %v118
    %v131 = vmul.f32 %v109, %v122
    %v133 = vlaneseq
    %v134 = vshrl.u32 %v133, 7
    %v135 = vsub.s32 0, %v134
    %v136 = vrot.slane %v48, %v135
    %v137 = vlaneseq
    %v138 = vshrl.u32 %v137, 7
    %v139 = vsub.s32 1, %v138
    %v140 = vrot.slane %v48, %v139
    %v141 = vlaneseq
    %v142 = vshrl.u32 %v141, 7
    %v143 = vsub.s32 2, %v142
    %v144 = vrot.slane %v48, %v143
    %v148 = vadd.f32 %v126, %v136
    %v149 = vadd.f32 %v127, %v140
    %v150 = vadd.f32 %v128, %v144
    %v151 = vadd.f32 %v129, %v136
    %v152 = vadd.f32 %v130, %v140
    %v153 = vadd.f32 %v131, %v144
    %154 = vst [vmem:[#allocation7] sm:$0xff] %v148
    %155 = vst [vmem:[#allocation7 + $0x8] sm:$0xff] %v149
    %156 = vst [vmem:[#allocation7 + $0x10] sm:$0xff] %v150
    %157 = vst [vmem:[#allocation7 + $0x18] sm:$0xff] %v151
    %158 = vst [vmem:[#allocation7 + $0x20] sm:$0xff] %v152
    %159 = vst [vmem:[#allocation7 + $0x28] sm:$0xff] %v153
    // Predicated region
    $region22: #{tpu_custom_call.1} parent=1 // pred_check
      _
    $region23: #{tpu_custom_call.1} parent=1 // pred_check_branch
      %161 = sbr.rel (0) target = $region25
    $region24: #{tpu_custom_call.1} parent=1 // pred_region
      %s163 = ssub.s32 768, 768
      %164 = vsyncadd [#allocation4], %s163
      %s165 = sshll.u32 [#allocation7], 4
      %s166 = int_to_ptr.vmem [resolvable:$true] %s165
      %171 = dma.vmem_to_hbm [thread:$0]  %s166, 768, %s3, [#allocation4], 384, 384, 24
    $region25: #{tpu_custom_call.1} parent=1 // pred_fallthru
      _
    // Predicated region
    $region26: #{tpu_custom_call.1} parent=1 // pred_check
      _
    $region27: #{tpu_custom_call.1} parent=1 // pred_check_branch
      %173 = sbr.rel (0) target = $region29
    $region28: #{tpu_custom_call.1} parent=1 // pred_region
      %174 = dma.done [#allocation4], 768
    $region29: #{tpu_custom_call.1} parent=1 // pred_fallthru
      _
    %175 = vsyncpa [#allocation3], 1
    %176 = vsyncpa [#allocation6], 1
    %177 = vsyncpa [#allocation4], 1

</llo_original>
